<compile_context>
chip_gen: v5e
topology: v5e:2x2
jax: 0.10.0
libtpu: 0.0.40
codegen_flags: <defaults>
</compile_context>

<pallas_src>
import functools

import jax
import jax.numpy as jnp
from jax.experimental import pallas as pl
from jax.experimental.pallas import tpu as pltpu

MAX_LENGTH = 10


def _round_up(x, m):
    return ((x + m - 1) // m) * m


def _geometry(H, V, L):
    """Lane layout of the packed weight slab (one 128-aligned segment per fused matmul)."""
    seg_ge = _round_up(L + H, 128)       # emb path:   [E@Wae | E@Wce]
    seg_gh = _round_up(L + 3 * H, 128)   # hidden path:[Wah | Whr | Whz | Whn]
    seg_gi = _round_up(3 * H, 128)       # GRU input:  [Wir | Wiz | Win]
    seg_ca = _round_up(H, 128)           # attn_applied @ Wca
    seg_out = _round_up(V, 128)          # h_new @ W_out.T
    c_ge = 0
    c_gh = c_ge + seg_ge
    c_gi = c_gh + seg_gh
    c_ca = c_gi + seg_gi
    c_out = c_ca + seg_ca
    return dict(
        seg_ge=seg_ge, seg_gh=seg_gh, seg_gi=seg_gi, seg_ca=seg_ca, seg_out=seg_out,
        c_ge=c_ge, c_gh=c_gh, c_gi=c_gi, c_ca=c_ca, c_out=c_out,
        total_w=c_out + seg_out,
        kr=_round_up(max(V, H), 8),            # slab row count (sublane-aligned)
        bias_w=_round_up(max(L, H, V), 128),   # bias slab lane width
        out_w=_round_up(V + H + L, 128),       # packed output lane width
    )


# ----------------------------------------------------------------------------- kernel
@functools.lru_cache(maxsize=None)
def _build_decoder_call(H, V, L):
    g = _geometry(H, V, L)
    f32 = jnp.float32

    def kernel(tok_ref, hid_ref, enc_ref, w_ref, b_ref, out_ref):
        tok = tok_ref[0]                               # int32 scalar (SMEM)
        h = hid_ref[...]                               # (1, H)

        # embedded = dropout(embedding(input)); eval-mode dropout == identity.
        # The embedding gather is folded into the emb-side weights at prep time,
        # so the lookup becomes a one-hot matmul against EW = E @ [Wae | Wce].
        iota = jax.lax.broadcasted_iota(jnp.int32, (1, g["kr"]), 1)
        onehot = (iota == tok).astype(f32)             # (1, kr)

        # Fused matmul #1: all emb-dependent pieces   -> [attn_e | comb_e]
        ge = jnp.dot(onehot, w_ref[:, g["c_ge"]:g["c_ge"] + g["seg_ge"]],
                     preferred_element_type=f32)
        # Fused matmul #2: all hidden-dependent pieces -> [attn_h | gh_r | gh_z | gh_n]
        gh = jnp.dot(h, w_ref[0:H, g["c_gh"]:g["c_gh"] + g["seg_gh"]],
                     preferred_element_type=f32)

        # attn_weights = softmax(attn(cat(embedded, hidden)))            -> (1, L)
        attn_logits = ge[:, 0:L] + gh[:, 0:L] + b_ref[0:1, 0:L]
        m = jnp.max(attn_logits, axis=-1, keepdims=True)
        e = jnp.exp(attn_logits - m)
        attn_w = e / jnp.sum(e, axis=-1, keepdims=True)

        # attn_applied = attn_weights @ encoder_outputs                  -> (1, H)
        applied = jnp.dot(attn_w, enc_ref[...], preferred_element_type=f32)

        # output = relu(attn_combine(cat(embedded, attn_applied)))       -> (1, H)
        comb_a = jnp.dot(applied, w_ref[0:H, g["c_ca"]:g["c_ca"] + g["seg_ca"]],
                         preferred_element_type=f32)
        comb = ge[:, L:L + H] + comb_a[:, 0:H] + b_ref[1:2, 0:H]
        x = jnp.maximum(comb, 0.0)

        # GRU cell (PyTorch gate order r, z, n); r/z biases pre-folded at prep time.
        gi = jnp.dot(x, w_ref[0:H, g["c_gi"]:g["c_gi"] + g["seg_gi"]],
                     preferred_element_type=f32)
        r = jax.nn.sigmoid(gi[:, 0:H] + gh[:, L:L + H] + b_ref[2:3, 0:H])
        z = jax.nn.sigmoid(gi[:, H:2 * H] + gh[:, L + H:L + 2 * H] + b_ref[3:4, 0:H])
        n = jnp.tanh(gi[:, 2 * H:3 * H] + b_ref[4:5, 0:H]
                     + r * (gh[:, L + 2 * H:L + 3 * H] + b_ref[5:6, 0:H]))
        h_new = (1.0 - z) * n + z * h                                   # (1, H)

        # output = log_softmax(out(h_new))                              -> (1, V)
        logits = jnp.dot(h_new, w_ref[0:H, g["c_out"]:g["c_out"] + g["seg_out"]],
                         preferred_element_type=f32)[:, 0:V] + b_ref[6:7, 0:V]
        m2 = jnp.max(logits, axis=-1, keepdims=True)
        sh = logits - m2
        logp = sh - jnp.log(jnp.sum(jnp.exp(sh), axis=-1, keepdims=True))

        # Pack all three results into one lane-padded row (single output DMA).
        out_ref[...] = jnp.zeros(out_ref.shape, f32)
        out_ref[:, 0:V] = logp
        out_ref[:, V:V + H] = h_new
        out_ref[:, V + H:V + H + L] = attn_w

    return pl.pallas_call(
        kernel,
        out_shape=jax.ShapeDtypeStruct((1, g["out_w"]), jnp.float32),
        in_specs=[
            pl.BlockSpec(memory_space=pltpu.MemorySpace.SMEM),   # token id (1,)
            pl.BlockSpec(memory_space=pltpu.MemorySpace.VMEM),   # hidden (1, H)
            pl.BlockSpec(memory_space=pltpu.MemorySpace.VMEM),   # encoder_outputs (L, H)
            pl.BlockSpec(memory_space=pltpu.MemorySpace.VMEM),   # weight slab (kr, total_w)
            pl.BlockSpec(memory_space=pltpu.MemorySpace.VMEM),   # bias slab (8, bias_w)
        ],
        out_specs=pl.BlockSpec(memory_space=pltpu.MemorySpace.VMEM),
    )


# ----------------------------------------------------------------------------- one-time prep
def prepare_params(params, *, hidden_size, output_size, max_length=MAX_LENGTH):
    """One-time weight preprocessing (NOT per step): transpose/split/fuse every
    Linear & GRU weight into a single lane-padded weight slab + one bias slab,
    with the embedding table folded into the emb-side weights."""
    H, V, L = hidden_size, output_size, max_length
    f32 = jnp.float32
    g = _geometry(H, V, L)

    E = params["embedding"].astype(f32)                # (V, H)
    W_attn = params["W_attn"].astype(f32)              # (L, 2H)
    W_comb = params["W_comb"].astype(f32)              # (H, 2H)
    W_ih = params["W_ih"].astype(f32)                  # (3H, H), gate order r, z, n
    W_hh = params["W_hh"].astype(f32)                  # (3H, H)
    W_out = params["W_out"].astype(f32)                # (V, H)

    Wae, Wah = W_attn[:, :H].T, W_attn[:, H:].T        # (H, L) each
    Wce, Wca = W_comb[:, :H].T, W_comb[:, H:].T        # (H, H) each
    Wir, Wiz, Win = W_ih[:H].T, W_ih[H:2 * H].T, W_ih[2 * H:].T
    Whr, Whz, Whn = W_hh[:H].T, W_hh[H:2 * H].T, W_hh[2 * H:].T

    EW = E @ jnp.concatenate([Wae, Wce], axis=1)              # (V, L+H)  embedding folded in
    W_H = jnp.concatenate([Wah, Whr, Whz, Whn], axis=1)       # (H, L+3H)
    W_X = jnp.concatenate([Wir, Wiz, Win], axis=1)            # (H, 3H)

    w_slab = jnp.zeros((g["kr"], g["total_w"]), f32)
    w_slab = w_slab.at[:V, g["c_ge"]:g["c_ge"] + L + H].set(EW)
    w_slab = w_slab.at[:H, g["c_gh"]:g["c_gh"] + L + 3 * H].set(W_H)
    w_slab = w_slab.at[:H, g["c_gi"]:g["c_gi"] + 3 * H].set(W_X)
    w_slab = w_slab.at[:H, g["c_ca"]:g["c_ca"] + H].set(Wca)
    w_slab = w_slab.at[:H, g["c_out"]:g["c_out"] + V].set(W_out.T)

    b_attn = params["b_attn"].astype(f32)
    b_comb = params["b_comb"].astype(f32)
    b_ih = params["b_ih"].astype(f32)
    b_hh = params["b_hh"].astype(f32)
    b_out = params["b_out"].astype(f32)

    b_slab = jnp.zeros((8, g["bias_w"]), f32)
    b_slab = b_slab.at[0, :L].set(b_attn)                           # attention bias
    b_slab = b_slab.at[1, :H].set(b_comb)                           # attn_combine bias
    b_slab = b_slab.at[2, :H].set(b_ih[:H] + b_hh[:H])              # r gate (folded)
    b_slab = b_slab.at[3, :H].set(b_ih[H:2 * H] + b_hh[H:2 * H])    # z gate (folded)
    b_slab = b_slab.at[4, :H].set(b_ih[2 * H:])                     # n gate, input side
    b_slab = b_slab.at[5, :H].set(b_hh[2 * H:])                     # n gate, hidden side
    b_slab = b_slab.at[6, :V].set(b_out)                            # output projection bias

    return {"w_slab": w_slab, "b_slab": b_slab}


# ----------------------------------------------------------------------------- per-step wrapper
@functools.partial(jax.jit, static_argnames=("hidden_size", "output_size", "max_length"))
def attn_decoder_forward(token, hidden, encoder_outputs, prepared, *,
                         hidden_size, output_size, max_length=MAX_LENGTH):
    """One decoder step. token: int32 (1,), hidden: (1,1,H), encoder_outputs: (L,H)."""
    H, V, L = hidden_size, output_size, max_length
    call = _build_decoder_call(H, V, L)

    tok = token.astype(jnp.int32).reshape((1,))
    hid2d = hidden.reshape(1, H).astype(jnp.float32)
    enc = encoder_outputs.astype(jnp.float32)

    packed = call(tok, hid2d, enc, prepared["w_slab"], prepared["b_slab"])
    logp = packed[:, 0:V]
    h_new = packed[:, V:V + H]
    attn_w = packed[:, V + H:V + H + L]
    return logp, h_new.reshape(1, 1, H), attn_w


# ----------------------------------------------------------------------------- reference (plain JAX)
def reference_forward(token, hidden, encoder_outputs, p, *, hidden_size):
    H = hidden_size
    emb = p["embedding"][token.reshape(())][None, :]          # (1, H)
    h = hidden.reshape(1, H)
    cat1 = jnp.concatenate([emb, h], axis=1)
    attn_w = jax.nn.softmax(cat1 @ p["W_attn"].T + p["b_attn"], axis=1)
    applied = attn_w @ encoder_outputs
    comb = jnp.concatenate([emb, applied], axis=1) @ p["W_comb"].T + p["b_comb"]
    x = jax.nn.relu(comb)
    gi = x @ p["W_ih"].T + p["b_ih"]
    gh = h @ p["W_hh"].T + p["b_hh"]
    r = jax.nn.sigmoid(gi[:, :H] + gh[:, :H])
    z = jax.nn.sigmoid(gi[:, H:2 * H] + gh[:, H:2 * H])
    n = jnp.tanh(gi[:, 2 * H:] + r * gh[:, 2 * H:])
    h_new = (1.0 - z) * n + z * h
    logp = jax.nn.log_softmax(h_new @ p["W_out"].T + p["b_out"], axis=1)
    return logp, h_new.reshape(1, 1, H), attn_w


# ----------------------------------------------------------------------------- main
if __name__ == "__main__":
    hidden_size = 32
    output_size = 48
    max_length = MAX_LENGTH

    key = jax.random.PRNGKey(0)
    ks = jax.random.split(key, 12)

    def init(k, shape, scale=0.1):
        return (scale * jax.random.normal(k, shape)).astype(jnp.float32)

    params = {
        "embedding": init(ks[0], (output_size, hidden_size)),
        "W_attn":    init(ks[1], (max_length, 2 * hidden_size)),
        "b_attn":    init(ks[2], (max_length,)),
        "W_comb":    init(ks[3], (hidden_size, 2 * hidden_size)),
        "b_comb":    init(ks[4], (hidden_size,)),
        "W_ih":      init(ks[5], (3 * hidden_size, hidden_size)),
        "b_ih":      init(ks[6], (3 * hidden_size,)),
        "W_hh":      init(ks[7], (3 * hidden_size, hidden_size)),
        "b_hh":      init(ks[8], (3 * hidden_size,)),
        "W_out":     init(ks[9], (output_size, hidden_size)),
        "b_out":     init(ks[10], (output_size,)),
    }

    token = jnp.array([7], dtype=jnp.int32)                         # decoder input token id
    hidden = init(ks[11], (1, 1, hidden_size))                      # previous hidden state
    encoder_outputs = init(jax.random.PRNGKey(1), (max_length, hidden_size))

    # One-time weight fusion/packing (hoisted out of the per-step path).
    prepared = prepare_params(params, hidden_size=hidden_size,
                              output_size=output_size, max_length=max_length)
    jax.block_until_ready(prepared)

    logp, h_new, attn_w = attn_decoder_forward(
        token, hidden, encoder_outputs, prepared,
        hidden_size=hidden_size, output_size=output_size, max_length=max_length)
    jax.block_until_ready((logp, h_new, attn_w))

    r_logp, r_h, r_w = reference_forward(token, hidden, encoder_outputs, params,
                                         hidden_size=hidden_size)
    assert jnp.allclose(logp, r_logp, atol=1e-4, rtol=1e-4)
    assert jnp.allclose(h_new, r_h, atol=1e-4, rtol=1e-4)
    assert jnp.allclose(attn_w, r_w, atol=1e-4, rtol=1e-4)

    print("KERNEL_OK")
</pallas_src>

<mosaic_0001>
module attributes {stable_mosaic.version = 11 : i64} {
  func.func @kernel(%arg0: memref<1xi32, #tpu.memory_space<smem>>, %arg1: memref<1x32xf32, #tpu.memory_space<vmem>>, %arg2: memref<10x32xf32, #tpu.memory_space<vmem>>, %arg3: memref<48x640xf32, #tpu.memory_space<vmem>>, %arg4: memref<8x128xf32, #tpu.memory_space<vmem>>, %arg5: memref<1x128xf32, #tpu.memory_space<vmem>>) attributes {dimension_semantics = [], scalar_prefetch = 0 : i64, scratch_operands = 0 : i64, tpu.core_type = #tpu.core_type<tc>} {
    %c0 = arith.constant 0 : index
    %0 = memref.load %arg0[%c0] : memref<1xi32, #tpu.memory_space<smem>>
    %c0_0 = arith.constant 0 : index
    %c0_1 = arith.constant 0 : index
    %1 = vector.load %arg1[%c0_0, %c0_1] : memref<1x32xf32, #tpu.memory_space<vmem>>, vector<1x32xf32>
    %2 = tpu.iota {dimensions = array<i32: 1>} : vector<1x48xi32>
    %3 = vector.broadcast %0 : i32 to vector<1x48xi32>
    %4 = arith.cmpi eq, %2, %3 : vector<1x48xi32>
    %5 = arith.extui %4 : vector<1x48xi1> to vector<1x48xi32>
    %6 = arith.sitofp %5 : vector<1x48xi32> to vector<1x48xf32>
    %c0_2 = arith.constant 0 : index
    %c0_3 = arith.constant 0 : index
    %7 = vector.load %arg3[%c0_2, %c0_3] : memref<48x640xf32, #tpu.memory_space<vmem>>, vector<48x128xf32>
    %cst = arith.constant dense<0.000000e+00> : vector<1x128xf32>
    %8 = tpu.matmul %6, %7, %cst {dimension_numbers = #tpu.dot_dimension_numbers<[1], [0], [0], [1], [0, 0, 1, 1], [], []>} : vector<1x48xf32>, vector<48x128xf32>, vector<1x128xf32> -> vector<1x128xf32>
    %c0_4 = arith.constant 0 : index
    %c128 = arith.constant 128 : index
    %9 = vector.load %arg3[%c0_4, %c128] : memref<48x640xf32, #tpu.memory_space<vmem>>, vector<32x128xf32>
    %cst_5 = arith.constant dense<0.000000e+00> : vector<1x128xf32>
    %10 = tpu.matmul %1, %9, %cst_5 {dimension_numbers = #tpu.dot_dimension_numbers<[1], [0], [0], [1], [0, 0, 1, 1], [], []>} : vector<1x32xf32>, vector<32x128xf32>, vector<1x128xf32> -> vector<1x128xf32>
    %11 = vector.extract_strided_slice %8 {offsets = [0, 0], sizes = [1, 10], strides = [1, 1]} : vector<1x128xf32> to vector<1x10xf32>
    %12 = vector.extract_strided_slice %10 {offsets = [0, 0], sizes = [1, 10], strides = [1, 1]} : vector<1x128xf32> to vector<1x10xf32>
    %13 = arith.addf %11, %12 : vector<1x10xf32>
    %c0_6 = arith.constant 0 : index
    %c0_7 = arith.constant 0 : index
    %14 = vector.load %arg4[%c0_6, %c0_7] : memref<8x128xf32, #tpu.memory_space<vmem>>, vector<1x10xf32>
    %15 = arith.addf %13, %14 : vector<1x10xf32>
    %cst_8 = arith.constant dense<0xFF800000> : vector<1xf32>
    %16 = vector.multi_reduction <maximumf>, %15, %cst_8 [1] : vector<1x10xf32> to vector<1xf32>
    %17 = vector.shape_cast %16 : vector<1xf32> to vector<1x1xf32>
    %18 = vector.broadcast %17 : vector<1x1xf32> to vector<1x10xf32>
    %19 = arith.subf %15, %18 : vector<1x10xf32>
    %20 = math.exp %19 : vector<1x10xf32>
    %cst_9 = arith.constant dense<0.000000e+00> : vector<1xf32>
    %21 = vector.multi_reduction <add>, %20, %cst_9 [1] : vector<1x10xf32> to vector<1xf32>
    %22 = vector.shape_cast %21 : vector<1xf32> to vector<1x1xf32>
    %23 = vector.broadcast %22 : vector<1x1xf32> to vector<1x10xf32>
    %24 = arith.divf %20, %23 : vector<1x10xf32>
    %c0_10 = arith.constant 0 : index
    %c0_11 = arith.constant 0 : index
    %25 = vector.load %arg2[%c0_10, %c0_11] : memref<10x32xf32, #tpu.memory_space<vmem>>, vector<10x32xf32>
    %cst_12 = arith.constant dense<0.000000e+00> : vector<1x32xf32>
    %26 = tpu.matmul %24, %25, %cst_12 {dimension_numbers = #tpu.dot_dimension_numbers<[1], [0], [0], [1], [0, 0, 1, 1], [], []>} : vector<1x10xf32>, vector<10x32xf32>, vector<1x32xf32> -> vector<1x32xf32>
    %c0_13 = arith.constant 0 : index
    %c384 = arith.constant 384 : index
    %27 = vector.load %arg3[%c0_13, %c384] : memref<48x640xf32, #tpu.memory_space<vmem>>, vector<32x128xf32>
    %cst_14 = arith.constant dense<0.000000e+00> : vector<1x128xf32>
    %28 = tpu.matmul %26, %27, %cst_14 {dimension_numbers = #tpu.dot_dimension_numbers<[1], [0], [0], [1], [0, 0, 1, 1], [], []>} : vector<1x32xf32>, vector<32x128xf32>, vector<1x128xf32> -> vector<1x128xf32>
    %29 = vector.extract_strided_slice %8 {offsets = [0, 10], sizes = [1, 32], strides = [1, 1]} : vector<1x128xf32> to vector<1x32xf32>
    %30 = vector.extract_strided_slice %28 {offsets = [0, 0], sizes = [1, 32], strides = [1, 1]} : vector<1x128xf32> to vector<1x32xf32>
    %31 = arith.addf %29, %30 : vector<1x32xf32>
    %c1 = arith.constant 1 : index
    %c0_15 = arith.constant 0 : index
    %32 = vector.load %arg4[%c1, %c0_15] : memref<8x128xf32, #tpu.memory_space<vmem>>, vector<1x32xf32>
    %33 = arith.addf %31, %32 : vector<1x32xf32>
    %cst_16 = arith.constant 0.000000e+00 : f32
    %34 = vector.broadcast %cst_16 : f32 to vector<1x32xf32>
    %35 = arith.maximumf %33, %34 : vector<1x32xf32>
    %c0_17 = arith.constant 0 : index
    %c256 = arith.constant 256 : index
    %36 = vector.load %arg3[%c0_17, %c256] : memref<48x640xf32, #tpu.memory_space<vmem>>, vector<32x128xf32>
    %cst_18 = arith.constant dense<0.000000e+00> : vector<1x128xf32>
    %37 = tpu.matmul %35, %36, %cst_18 {dimension_numbers = #tpu.dot_dimension_numbers<[1], [0], [0], [1], [0, 0, 1, 1], [], []>} : vector<1x32xf32>, vector<32x128xf32>, vector<1x128xf32> -> vector<1x128xf32>
    %38 = vector.extract_strided_slice %37 {offsets = [0, 0], sizes = [1, 32], strides = [1, 1]} : vector<1x128xf32> to vector<1x32xf32>
    %39 = vector.extract_strided_slice %10 {offsets = [0, 10], sizes = [1, 32], strides = [1, 1]} : vector<1x128xf32> to vector<1x32xf32>
    %40 = arith.addf %38, %39 : vector<1x32xf32>
    %c2 = arith.constant 2 : index
    %c0_19 = arith.constant 0 : index
    %41 = vector.load %arg4[%c2, %c0_19] : memref<8x128xf32, #tpu.memory_space<vmem>>, vector<1x32xf32>
    %42 = arith.addf %40, %41 : vector<1x32xf32>
    %43 = arith.negf %42 : vector<1x32xf32>
    %44 = math.exp %43 : vector<1x32xf32>
    %cst_20 = arith.constant 1.000000e+00 : f32
    %45 = vector.broadcast %cst_20 : f32 to vector<1x32xf32>
    %46 = arith.addf %45, %44 : vector<1x32xf32>
    %47 = arith.divf %45, %46 : vector<1x32xf32>
    %48 = vector.extract_strided_slice %37 {offsets = [0, 32], sizes = [1, 32], strides = [1, 1]} : vector<1x128xf32> to vector<1x32xf32>
    %49 = vector.extract_strided_slice %10 {offsets = [0, 42], sizes = [1, 32], strides = [1, 1]} : vector<1x128xf32> to vector<1x32xf32>
    %50 = arith.addf %48, %49 : vector<1x32xf32>
    %c3 = arith.constant 3 : index
    %c0_21 = arith.constant 0 : index
    %51 = vector.load %arg4[%c3, %c0_21] : memref<8x128xf32, #tpu.memory_space<vmem>>, vector<1x32xf32>
    %52 = arith.addf %50, %51 : vector<1x32xf32>
    %53 = arith.negf %52 : vector<1x32xf32>
    %54 = math.exp %53 : vector<1x32xf32>
    %cst_22 = arith.constant 1.000000e+00 : f32
    %55 = vector.broadcast %cst_22 : f32 to vector<1x32xf32>
    %56 = arith.addf %55, %54 : vector<1x32xf32>
    %57 = arith.divf %55, %56 : vector<1x32xf32>
    %58 = vector.extract_strided_slice %37 {offsets = [0, 64], sizes = [1, 32], strides = [1, 1]} : vector<1x128xf32> to vector<1x32xf32>
    %c4 = arith.constant 4 : index
    %c0_23 = arith.constant 0 : index
    %59 = vector.load %arg4[%c4, %c0_23] : memref<8x128xf32, #tpu.memory_space<vmem>>, vector<1x32xf32>
    %60 = arith.addf %58, %59 : vector<1x32xf32>
    %61 = vector.extract_strided_slice %10 {offsets = [0, 74], sizes = [1, 32], strides = [1, 1]} : vector<1x128xf32> to vector<1x32xf32>
    %c5 = arith.constant 5 : index
    %c0_24 = arith.constant 0 : index
    %62 = vector.load %arg4[%c5, %c0_24] : memref<8x128xf32, #tpu.memory_space<vmem>>, vector<1x32xf32>
    %63 = arith.addf %61, %62 : vector<1x32xf32>
    %64 = arith.mulf %47, %63 : vector<1x32xf32>
    %65 = arith.addf %60, %64 : vector<1x32xf32>
    %66 = math.tanh %65 : vector<1x32xf32>
    %cst_25 = arith.constant 1.000000e+00 : f32
    %67 = vector.broadcast %cst_25 : f32 to vector<1x32xf32>
    %68 = arith.subf %67, %57 : vector<1x32xf32>
    %69 = arith.mulf %68, %66 : vector<1x32xf32>
    %70 = arith.mulf %57, %1 : vector<1x32xf32>
    %71 = arith.addf %69, %70 : vector<1x32xf32>
    %c0_26 = arith.constant 0 : index
    %c512 = arith.constant 512 : index
    %72 = vector.load %arg3[%c0_26, %c512] : memref<48x640xf32, #tpu.memory_space<vmem>>, vector<32x128xf32>
    %cst_27 = arith.constant dense<0.000000e+00> : vector<1x128xf32>
    %73 = tpu.matmul %71, %72, %cst_27 {dimension_numbers = #tpu.dot_dimension_numbers<[1], [0], [0], [1], [0, 0, 1, 1], [], []>} : vector<1x32xf32>, vector<32x128xf32>, vector<1x128xf32> -> vector<1x128xf32>
    %74 = vector.extract_strided_slice %73 {offsets = [0, 0], sizes = [1, 48], strides = [1, 1]} : vector<1x128xf32> to vector<1x48xf32>
    %c6 = arith.constant 6 : index
    %c0_28 = arith.constant 0 : index
    %75 = vector.load %arg4[%c6, %c0_28] : memref<8x128xf32, #tpu.memory_space<vmem>>, vector<1x48xf32>
    %76 = arith.addf %74, %75 : vector<1x48xf32>
    %cst_29 = arith.constant dense<0xFF800000> : vector<1xf32>
    %77 = vector.multi_reduction <maximumf>, %76, %cst_29 [1] : vector<1x48xf32> to vector<1xf32>
    %78 = vector.shape_cast %77 : vector<1xf32> to vector<1x1xf32>
    %79 = vector.broadcast %78 : vector<1x1xf32> to vector<1x48xf32>
    %80 = arith.subf %76, %79 : vector<1x48xf32>
    %81 = math.exp %80 : vector<1x48xf32>
    %cst_30 = arith.constant dense<0.000000e+00> : vector<1xf32>
    %82 = vector.multi_reduction <add>, %81, %cst_30 [1] : vector<1x48xf32> to vector<1xf32>
    %83 = vector.shape_cast %82 : vector<1xf32> to vector<1x1xf32>
    %84 = math.log %83 : vector<1x1xf32>
    %85 = vector.broadcast %84 : vector<1x1xf32> to vector<1x48xf32>
    %86 = arith.subf %80, %85 : vector<1x48xf32>
    %cst_31 = arith.constant 0.000000e+00 : f32
    %87 = vector.broadcast %cst_31 : f32 to vector<1x128xf32>
    %c0_32 = arith.constant 0 : index
    %c0_33 = arith.constant 0 : index
    %88 = vector.load %arg5[%c0_32, %c0_33] : memref<1x128xf32, #tpu.memory_space<vmem>>, vector<1x128xf32>
    tpu.vector_store %arg5[%c0_32, %c0_33], %87 {strides = array<i32>} : memref<1x128xf32, #tpu.memory_space<vmem>>, vector<1x128xf32>,
    %c0_34 = arith.constant 0 : index
    %c0_35 = arith.constant 0 : index
    %89 = vector.load %arg5[%c0_34, %c0_35] : memref<1x128xf32, #tpu.memory_space<vmem>>, vector<1x48xf32>
    tpu.vector_store %arg5[%c0_34, %c0_35], %86 {strides = array<i32>} : memref<1x128xf32, #tpu.memory_space<vmem>>, vector<1x48xf32>,
    %c0_36 = arith.constant 0 : index
    %c48 = arith.constant 48 : index
    %90 = vector.load %arg5[%c0_36, %c48] : memref<1x128xf32, #tpu.memory_space<vmem>>, vector<1x32xf32>
    tpu.vector_store %arg5[%c0_36, %c48], %71 {strides = array<i32>} : memref<1x128xf32, #tpu.memory_space<vmem>>, vector<1x32xf32>,
    %c0_37 = arith.constant 0 : index
    %c80 = arith.constant 80 : index
    %91 = vector.load %arg5[%c0_37, %c80] : memref<1x128xf32, #tpu.memory_space<vmem>>, vector<1x10xf32>
    tpu.vector_store %arg5[%c0_37, %c80], %24 {strides = array<i32>} : memref<1x128xf32, #tpu.memory_space<vmem>>, vector<1x10xf32>,
    return
  }
}

</mosaic_0001>

<llo_original>
// kernel: attn_decoder_forward.1
$region0: #{attn_decoder_forward.1}
  #allocation0 [shape = 'u32[]', space=smem, size = 0x4, offset = 0x4, fixed_abs, tag = 'smem constant byte address 0x4 - core index']
  #allocation1 [shape = 'u32[72,128]{1,0:T(1,128)}', space=vmem, size = 0x9000, scoped, tag = 'internal scratch']
  #allocation2 [shape = 's32[1]{0:T(128)S(6)}', space=smem, size = 0x200, scoped, tag = 'scoped memory for attn_decoder_forward.1']
  %s0 = inlined_call_operand.<no memory space> [shape: s32[1], index: 0, kind: input, shape index: {}]
  %s1 = inlined_call_operand.vmem [shape: f32[1,32], index: 1, kind: input, shape index: {}]
  %s2 = inlined_call_operand.hbm [shape: f32[10,32], index: 2, kind: input, shape index: {}]
  %s3 = inlined_call_operand.hbm [shape: f32[48,640], index: 3, kind: input, shape index: {}]
  %s4 = inlined_call_operand.hbm [shape: f32[8,128], index: 4, kind: input, shape index: {}]
  %s5 = inlined_call_operand.vmem [shape: f32[1,128], index: 5, kind: output, shape index: {}]
  %s6 = sld [smem:[#allocation0]]
  $region42: #{attn_decoder_forward.1} parent=0
    _
  %s8 = ssub.s32 1, %s6
  %s9 = scalar_select 0, %s8, %s6
  %10 = sst [smem:[#allocation2]] %s0
  $region1: #{attn_decoder_forward.1} parent=0
    #allocation3 [shape = 'u8[8192]{0}', space=vmem, size = 0x2000, scoped, tag = 'input window, operand 2, single buffered']
    #allocation4 [shape = 's32[1]{0}', space=sflag, size = 0x4, scoped, tag = 'scoped memory for attn_decoder_forward.1']
    #allocation5 [shape = 'u8[122880]{0}', space=vmem, size = 0x1e000, scoped, tag = 'input window, operand 3, single buffered']
    #allocation6 [shape = 's32[1]{0}', space=sflag, size = 0x4, scoped, tag = 'scoped memory for attn_decoder_forward.1']
    #allocation7 [shape = 'u8[4096]{0}', space=vmem, size = 0x1000, scoped, tag = 'input window, operand 4, single buffered']
    %11 = vsyncpa [#allocation4], 0
    %12 = vsyncpa [#allocation6], 0
    // Predicated region
    $region2: #{attn_decoder_forward.1} parent=1 // pred_check
      _
    $region3: #{attn_decoder_forward.1} parent=1 // pred_check_branch
      %14 = sbr.rel (0) target = $region5
    $region4: #{attn_decoder_forward.1} parent=1 // pred_region
      _
    $region5: #{attn_decoder_forward.1} parent=1 // pred_fallthru
      _
    // Predicated region
    $region6: #{attn_decoder_forward.1} parent=1 // pred_check
      _
    $region7: #{attn_decoder_forward.1} parent=1 // pred_check_branch
      %16 = sbr.rel (0) target = $region9
    $region8: #{attn_decoder_forward.1} parent=1 // pred_region
      _
    $region9: #{attn_decoder_forward.1} parent=1 // pred_fallthru
      _
    // Predicated region
    $region10: #{attn_decoder_forward.1} parent=1 // pred_check
      _
    $region11: #{attn_decoder_forward.1} parent=1 // pred_check_branch
      %18 = sbr.rel (0) target = $region13
    $region12: #{attn_decoder_forward.1} parent=1 // pred_region
      %20 = vsyncadd [#allocation4], 0
      %s21 = sshll.u32 %s2, 4
      %s22 = int_to_ptr.hbm [resolvable:$true] %s21
      %s23 = sshll.u32 [#allocation3], 4
      %s24 = int_to_ptr.vmem [resolvable:$true] %s23
      %29 = dma.hbm_to_vmem [thread:$0]  %s22, 256, %s24, [#allocation4], 128, 128, 8
    $region13: #{attn_decoder_forward.1} parent=1 // pred_fallthru
      _
    // Predicated region
    $region14: #{attn_decoder_forward.1} parent=1 // pred_check
      _
    $region15: #{attn_decoder_forward.1} parent=1 // pred_check_branch
      %31 = sbr.rel (0) target = $region17
    $region16: #{attn_decoder_forward.1} parent=1 // pred_region
      %33 = vsyncadd [#allocation6], 0
      %s34 = sshll.u32 %s3, 4
      %s35 = int_to_ptr.hbm [resolvable:$true] %s34
      %s36 = sshll.u32 [#allocation5], 4
      %s37 = int_to_ptr.vmem [resolvable:$true] %s36
      %42 = dma.hbm_to_vmem [thread:$0]  %s35, 3840, %s37, [#allocation6], 640, 640, 40
    $region17: #{attn_decoder_forward.1} parent=1 // pred_fallthru
      _
    // Predicated region
    $region18: #{attn_decoder_forward.1} parent=1 // pred_check
      _
    $region19: #{attn_decoder_forward.1} parent=1 // pred_check_branch
      %44 = sbr.rel (0) target = $region21
    $region20: #{attn_decoder_forward.1} parent=1 // pred_region
      %46 = vsyncadd [#allocation6], 0
      %s48 = sshll.u32 %s4, 4
      %s49 = int_to_ptr.hbm [resolvable:$true] %s48
      %s50 = sshll.u32 [#allocation7], 4
      %s51 = int_to_ptr.vmem [resolvable:$true] %s50
      %53 = dma.hbm_to_vmem [thread:$0]  %s49, 128, %s51, [#allocation6]
    $region21: #{attn_decoder_forward.1} parent=1 // pred_fallthru
      _
    // Predicated region
    $region22: #{attn_decoder_forward.1} parent=1 // pred_check
      _
    $region23: #{attn_decoder_forward.1} parent=1 // pred_check_branch
      %55 = sbr.rel (0) target = $region25
    $region24: #{attn_decoder_forward.1} parent=1 // pred_region
      %57 = dma.done [#allocation4], 256
    $region25: #{attn_decoder_forward.1} parent=1 // pred_fallthru
      _
    // Predicated region
    $region26: #{attn_decoder_forward.1} parent=1 // pred_check
      _
    $region27: #{attn_decoder_forward.1} parent=1 // pred_check_branch
      %59 = sbr.rel (0) target = $region29
    $region28: #{attn_decoder_forward.1} parent=1 // pred_region
      %61 = dma.done [#allocation6], 3840
    $region29: #{attn_decoder_forward.1} parent=1 // pred_fallthru
      _
    // Predicated region
    $region30: #{attn_decoder_forward.1} parent=1 // pred_check
      _
    $region31: #{attn_decoder_forward.1} parent=1 // pred_check_branch
      %63 = sbr.rel (0) target = $region33
    $region32: #{attn_decoder_forward.1} parent=1 // pred_region
      %65 = dma.done [#allocation6], 128
    $region33: #{attn_decoder_forward.1} parent=1 // pred_fallthru
      _
    %s66 = sld [smem:[#allocation2]]
    %v67 = vld [vmem:[%s1] sm:$0x1]
    %v68 = vlaneseq
    %v69 = vand.u32 %v68, 127
    %v70 = vstv %s66
    %vm71 = vcmp.eq.s32.totalorder %v69, %v70
    %v72 = vsel %vm71, 1, 0
    %v73 = vcvt.s32.f32 %v72
    %v74 = vld [vmem:[#allocation5] sm:$0xff]
    %v75 = vld [vmem:[#allocation5 + $0x28] sm:$0xff]
    %v76 = vld [vmem:[#allocation5 + $0x50] sm:$0xff]
    %v77 = vld [vmem:[#allocation5 + $0x78] sm:$0xff]
    %v78 = vld [vmem:[#allocation5 + $0xa0] sm:$0xff]
    %v79 = vld [vmem:[#allocation5 + $0xc8] sm:$0xff]
    %vm80 = vcmask 392192
    %v82 = vsel %vm80, %v73, 0
    %84 = vmatpush.msra.mxu0 0.0
    %85 = vmatpush.msra.mxu0 0.0
    %86 = vmatpush.msra.mxu0 0.0
    %87 = vmatpush.msra.mxu0 0.0
    %88 = vmatpush.msra.mxu0 0.0
    %89 = vmatpush.msra.mxu0 0.0
    %90 = vmatpush.msra.mxu0 0.0
    %91 = vmatpush.msra.mxu0 0.0
    %92 = vmatpush.msra.mxu0 0.0
    %93 = vmatpush.msra.mxu0 0.0
    %94 = vmatpush.msra.mxu0 %v79
    %95 = vmatpush.msra.mxu0 %v78
    %96 = vmatpush.msra.mxu0 %v77
    %97 = vmatpush.msra.mxu0 %v76
    %98 = vmatpush.msra.mxu0 %v75
    %99 = vmatpush.msra.mxu0 %v74
    %100 = vmatmul.f32.gmra.mxu0 %v82
    %v101 = vpop.f32.mrf.mxu0
    %v102 = vadd.f32 0.0, %v101
    %103 = vdwg.mxu0
    %v104 = vld [vmem:[#allocation5 + $0x8] sm:$0xff]
    %v105 = vld [vmem:[#allocation5 + $0x30] sm:$0xff]
    %v106 = vld [vmem:[#allocation5 + $0x58] sm:$0xff]
    %v107 = vld [vmem:[#allocation5 + $0x80] sm:$0xff]
    %vm108 = vcmask 261120
    %v110 = vsel %vm108, %v67, 0
    %112 = vmatpush.msra.mxu0 0.0
    %113 = vmatpush.msra.mxu0 0.0
    %114 = vmatpush.msra.mxu0 0.0
    %115 = vmatpush.msra.mxu0 0.0
    %116 = vmatpush.msra.mxu0 0.0
    %117 = vmatpush.msra.mxu0 0.0
    %118 = vmatpush.msra.mxu0 0.0
    %119 = vmatpush.msra.mxu0 0.0
    %120 = vmatpush.msra.mxu0 0.0
    %121 = vmatpush.msra.mxu0 0.0
    %122 = vmatpush.msra.mxu0 0.0
    %123 = vmatpush.msra.mxu0 0.0
    %124 = vmatpush.msra.mxu0 %v107
    %125 = vmatpush.msra.mxu0 %v106
    %126 = vmatpush.msra.mxu0 %v105
    %127 = vmatpush.msra.mxu0 %v104
    %128 = vmatmul.f32.gmra.mxu0 %v110
    %v129 = vpop.f32.mrf.mxu0
    %v130 = vadd.f32 0.0, %v129
    %131 = vdwg.mxu0
    %v132 = vadd.f32 %v102, %v130
    %v133 = vld [vmem:[#allocation7] sm:$0x1]
    %v134 = vadd.f32 %v132, %v133
    %vm135 = vcmask 73728
    %v136 = vsel %vm135, %v134, -inf
    %137 = vmax.xlane.f32.xlu0 %v136
    %v138 = vpop.xlane.xlu0 %137
    %v139 = vsub.f32 %v134, %v138
    %v140 = vmul.f32 %v139, 1.442695
    %v141 = vpow.pop %v140
    %v142 = vsel %vm135, %v141, 0.0
    %143 = vadd.xlane.f32.xlu0 %v142
    %v144 = vpop.xlane.xlu0 %143
    %v145 = vrcp.pop %v144
    %v146 = vmul.f32 %v144, %v145
    %v147 = vsub.f32 1.0, %v146
    %v148 = vmul.f32 %v145, %v147
    %v149 = vadd.f32 %v145, %v148
    %vm150 = vweird.f32 %v144
    %vm151 = vweird.f32 %v145
    %vm152 = vmor %vm150, %vm151
    %v153 = vsel %vm152, %v145, %v149
    %v154 = vand.u32 2147483647, %v144
    %vm155 = vcmp.eq.f32.partialorder %v154, 8.507059e+37
    %v156 = vand.u32 %v144, 2147483648
    %v157 = vor.u32 1.1754944e-38, %v156
    %v158 = vsel %vm155, %v157, %v153
    %v159 = vmul.f32 %v141, %v158
    %v160 = vld [vmem:[#allocation3] sm:$0xff]
    %v161 = vld [vmem:[#allocation3 + $0x8] sm:$0x3]
    %vm162 = vcmask 80896
    %v164 = vsel %vm162, %v159, 0
    %vm166 = vcmask 1041408
    %v168 = vsel %vm166, %v161, 0
    %170 = vmatpush.msra.mxu0 0.0
    %171 = vmatpush.msra.mxu0 0.0
    %172 = vmatpush.msra.mxu0 0.0
    %173 = vmatpush.msra.mxu0 0.0
    %174 = vmatpush.msra.mxu0 0.0
    %175 = vmatpush.msra.mxu0 0.0
    %176 = vmatpush.msra.mxu0 0.0
    %177 = vmatpush.msra.mxu0 0.0
    %178 = vmatpush.msra.mxu0 0.0
    %179 = vmatpush.msra.mxu0 0.0
    %180 = vmatpush.msra.mxu0 0.0
    %181 = vmatpush.msra.mxu0 0.0
    %182 = vmatpush.msra.mxu0 0.0
    %183 = vmatpush.msra.mxu0 0.0
    %184 = vmatpush.msra.mxu0 %v168
    %185 = vmatpush.msra.mxu0 %v160
    %186 = vmatmul.f32.gmra.mxu0 %v164
    %v187 = vpop.f32.mrf.mxu0
    %v188 = vadd.f32 0.0, %v187
    %189 = vdwg.mxu0
    %v190 = vld [vmem:[#allocation5 + $0x18] sm:$0xff]
    %v191 = vld [vmem:[#allocation5 + $0x40] sm:$0xff]
    %v192 = vld [vmem:[#allocation5 + $0x68] sm:$0xff]
    %v193 = vld [vmem:[#allocation5 + $0x90] sm:$0xff]
    %v195 = vsel %vm108, %v188, 0
    %197 = vmatpush.msra.mxu0 0.0
    %198 = vmatpush.msra.mxu0 0.0
    %199 = vmatpush.msra.mxu0 0.0
    %200 = vmatpush.msra.mxu0 0.0
    %201 = vmatpush.msra.mxu0 0.0
    %202 = vmatpush.msra.mxu0 0.0
    %203 = vmatpush.msra.mxu0 0.0
    %204 = vmatpush.msra.mxu0 0.0
    %205 = vmatpush.msra.mxu0 0.0
    %206 = vmatpush.msra.mxu0 0.0
    %207 = vmatpush.msra.mxu0 0.0
    %208 = vmatpush.msra.mxu0 0.0
    %209 = vmatpush.msra.mxu0 %v193
    %210 = vmatpush.msra.mxu0 %v192
    %211 = vmatpush.msra.mxu0 %v191
    %212 = vmatpush.msra.mxu0 %v190
    %213 = vmatmul.f32.gmra.mxu0 %v195
    %v214 = vpop.f32.mrf.mxu0
    %v215 = vadd.f32 0.0, %v214
    %216 = vdwg.mxu0
    %218 = vrot.lane.b32.xlu0 %v215, 10
    %v219 = vpop.permute.xlu0 %218
    %v221 = vadd.f32 %v102, %v219
    %v222 = vld [vmem:[#allocation7 + $0x1] sm:$0x1]
    %224 = vrot.lane.b32.xlu0 %v222, 10
    %v225 = vpop.permute.xlu0 %224
    %v227 = vadd.f32 %v221, %v225
    %v228 = vmax.f32 %v227, 0.0
    %v229 = vld [vmem:[#allocation5 + $0x10] sm:$0xff]
    %v230 = vld [vmem:[#allocation5 + $0x38] sm:$0xff]
    %v231 = vld [vmem:[#allocation5 + $0x60] sm:$0xff]
    %v232 = vld [vmem:[#allocation5 + $0x88] sm:$0xff]
    %234 = vrot.lane.b32.xlu0 %v228, 118
    %v235 = vpop.permute.xlu0 %234
    %v236 = vsel %vm108, %v235, 0
    %238 = vmatpush.msra.mxu0 0.0
    %239 = vmatpush.msra.mxu0 0.0
    %240 = vmatpush.msra.mxu0 0.0
    %241 = vmatpush.msra.mxu0 0.0
    %242 = vmatpush.msra.mxu0 0.0
    %243 = vmatpush.msra.mxu0 0.0
    %244 = vmatpush.msra.mxu0 0.0
    %245 = vmatpush.msra.mxu0 0.0
    %246 = vmatpush.msra.mxu0 0.0
    %247 = vmatpush.msra.mxu0 0.0
    %248 = vmatpush.msra.mxu0 0.0
    %249 = vmatpush.msra.mxu0 0.0
    %250 = vmatpush.msra.mxu0 %v232
    %251 = vmatpush.msra.mxu0 %v231
    %252 = vmatpush.msra.mxu0 %v230
    %253 = vmatpush.msra.mxu0 %v229
    %254 = vmatmul.f32.gmra.mxu0 %v236
    %v255 = vpop.f32.mrf.mxu0
    %v256 = vadd.f32 0.0, %v255
    %257 = vdwg.mxu0
    %259 = vrot.lane.b32.xlu0 %v130, 118
    %v260 = vpop.permute.xlu0 %259
    %v262 = vadd.f32 %v256, %v260
    %v263 = vld [vmem:[#allocation7 + $0x2] sm:$0x1]
    %v264 = vadd.f32 %v262, %v263
    %v265 = vxor.u32 %v264, 2147483648
    %v266 = vmul.f32 %v265, 1.442695
    %v267 = vpow.pop %v266
    %v268 = vadd.f32 %v267, 1.0
    %v269 = vrcp.pop %v268
    %v270 = vmul.f32 %v268, %v269
    %v271 = vsub.f32 1.0, %v270
    %v272 = vmul.f32 %v269, %v271
    %v273 = vadd.f32 %v269, %v272
    %vm274 = vweird.f32 %v268
    %vm275 = vweird.f32 %v269
    %vm276 = vmor %vm274, %vm275
    %v277 = vsel %vm276, %v269, %v273
    %v278 = vand.u32 2147483647, %v268
    %vm279 = vcmp.eq.f32.partialorder %v278, 8.507059e+37
    %v280 = vand.u32 %v268, 2147483648
    %v281 = vor.u32 1.1754944e-38, %v280
    %v282 = vsel %vm279, %v281, %v277
    %v283 = vmul.f32 1.0, %v282
    %v284 = vld [vmem:[#allocation7 + $0x3] sm:$0x1]
    %286 = vrot.lane.b32.xlu0 %v284, 32
    %v287 = vpop.permute.xlu0 %286
    %v289 = vadd.f32 %v262, %v287
    %v290 = vxor.u32 %v289, 2147483648
    %v291 = vmul.f32 %v290, 1.442695
    %v292 = vpow.pop %v291
    %v293 = vadd.f32 %v292, 1.0
    %v294 = vrcp.pop %v293
    %v295 = vmul.f32 %v293, %v294
    %v296 = vsub.f32 1.0, %v295
    %v297 = vmul.f32 %v294, %v296
    %v298 = vadd.f32 %v294, %v297
    %vm299 = vweird.f32 %v293
    %vm300 = vweird.f32 %v294
    %vm301 = vmor %vm299, %vm300
    %v302 = vsel %vm301, %v294, %v298
    %v303 = vand.u32 2147483647, %v293
    %vm304 = vcmp.eq.f32.partialorder %v303, 8.507059e+37
    %v305 = vand.u32 %v293, 2147483648
    %v306 = vor.u32 1.1754944e-38, %v305
    %v307 = vsel %vm304, %v306, %v302
    %v308 = vmul.f32 1.0, %v307
    %v309 = vld [vmem:[#allocation7 + $0x4] sm:$0x1]
    %311 = vrot.lane.b32.xlu0 %v309, 64
    %v312 = vpop.permute.xlu0 %311
    %v314 = vadd.f32 %v256, %v312
    %v315 = vld [vmem:[#allocation7 + $0x5] sm:$0x1]
    %317 = vrot.lane.b32.xlu0 %v315, 74
    %v318 = vpop.permute.xlu0 %317
    %v320 = vadd.f32 %v130, %v318
    %322 = vrot.lane.b32.xlu0 %v320, 54
    %v323 = vpop.permute.xlu0 %322
    %v325 = vmul.f32 %v283, %v323
    %327 = vrot.lane.b32.xlu0 %v325, 64
    %v328 = vpop.permute.xlu0 %327
    %v330 = vadd.f32 %v314, %v328
    %v331 = vtanh.pop %v330
    %v332 = vsub.f32 1.0, %v308
    %334 = vrot.lane.b32.xlu0 %v331, 96
    %v335 = vpop.permute.xlu0 %334
    %v337 = vmul.f32 %v332, %v335
    %v338 = vperm.slane %v67, 0
    %339 = vrot.lane.b32.xlu0 %v338, 32
    %v340 = vpop.permute.xlu0 %339
    %v342 = vmul.f32 %v308, %v340
    %v343 = vadd.f32 %v337, %v342
    %v344 = vld [vmem:[#allocation5 + $0x20] sm:$0xff]
    %v345 = vld [vmem:[#allocation5 + $0x48] sm:$0xff]
    %v346 = vld [vmem:[#allocation5 + $0x70] sm:$0xff]
    %v347 = vld [vmem:[#allocation5 + $0x98] sm:$0xff]
    %349 = vrot.lane.b32.xlu0 %v343, 96
    %v350 = vpop.permute.xlu0 %349
    %v351 = vsel %vm108, %v350, 0
    %353 = vmatpush.msra.mxu0 0.0
    %354 = vmatpush.msra.mxu0 0.0
    %355 = vmatpush.msra.mxu0 0.0
    %356 = vmatpush.msra.mxu0 0.0
    %357 = vmatpush.msra.mxu0 0.0
    %358 = vmatpush.msra.mxu0 0.0
    %359 = vmatpush.msra.mxu0 0.0
    %360 = vmatpush.msra.mxu0 0.0
    %361 = vmatpush.msra.mxu0 0.0
    %362 = vmatpush.msra.mxu0 0.0
    %363 = vmatpush.msra.mxu0 0.0
    %364 = vmatpush.msra.mxu0 0.0
    %365 = vmatpush.msra.mxu0 %v347
    %366 = vmatpush.msra.mxu0 %v346
    %367 = vmatpush.msra.mxu0 %v345
    %368 = vmatpush.msra.mxu0 %v344
    %369 = vmatmul.f32.gmra.mxu0 %v351
    %v370 = vpop.f32.mrf.mxu0
    %v371 = vadd.f32 0.0, %v370
    %372 = vdwg.mxu0
    %v373 = vld [vmem:[#allocation7 + $0x6] sm:$0x1]
    %v374 = vadd.f32 %v371, %v373
    %vm375 = vcmask 385024
    %v376 = vsel %vm375, %v374, -inf
    %377 = vmax.xlane.f32.xlu0 %v376
    %v378 = vpop.xlane.xlu0 %377
    %v379 = vsub.f32 %v374, %v378
    %v380 = vmul.f32 %v379, 1.442695
    %v381 = vpow.pop %v380
    %v382 = vsel %vm375, %v381, 0.0
    %383 = vadd.xlane.f32.xlu0 %v382
    %v384 = vpop.xlane.xlu0 %383
    %v385 = vlog2.pop %v384
    %v386 = vmul.f32 %v385, 0.6931472
    %v387 = vsub.f32 %v379, %v386
    %388 = vst [vmem:[%s5] sm:$0x1] 0.0
    %389 = vst.msk [vmem:[%s5] sm:$0x1] %vm375, %v387
    %390 = vrot.lane.b32.xlu0 %v343, 16
    %v391 = vpop.permute.xlu0 %390
    %vm393 = vcmask 647552
    %394 = vst.msk [vmem:[%s5] sm:$0x1] %vm393, %v391
    %395 = vrot.lane.b32.xlu0 %v159, 80
    %v396 = vpop.permute.xlu0 %395
    %vm398 = vcmask 729728
    %399 = vst.msk [vmem:[%s5] sm:$0x1] %vm398, %v396
    // Predicated region
    $region34: #{attn_decoder_forward.1} parent=1 // pred_check
      _
    $region35: #{attn_decoder_forward.1} parent=1 // pred_check_branch
      %401 = sbr.rel (0) target = $region37
    $region36: #{attn_decoder_forward.1} parent=1 // pred_region
      _
    $region37: #{attn_decoder_forward.1} parent=1 // pred_fallthru
      _
    // Predicated region
    $region38: #{attn_decoder_forward.1} parent=1 // pred_check
      _
    $region39: #{attn_decoder_forward.1} parent=1 // pred_check_branch
      %403 = sbr.rel (0) target = $region41
    $region40: #{attn_decoder_forward.1} parent=1 // pred_region
      _
    $region41: #{attn_decoder_forward.1} parent=1 // pred_fallthru
      _
    %404 = vsyncpa [#allocation4], 1
    %405 = vsyncpa [#allocation6], 1

</llo_original>
